<compile_context>
chip_gen: v7x
topology: tpu7x:2x2x1
jax: 0.10.0
libtpu: 0.0.40
codegen_flags: <defaults>
</compile_context>

<pallas_src>
import functools
import math

import jax
import jax.numpy as jnp
from jax.experimental import pallas as pl
from jax.experimental.pallas import tpu as pltpu

LAYER_NORM_EPS = 1e-12  # config.layer_norm_eps (BERT-style default)


def _round_up(x, m):
    return ((x + m - 1) // m) * m


def _cdiv(a, b):
    return -(-a // b)


# --------------------------------------------------------------------------- #
# Kernels
# --------------------------------------------------------------------------- #
def _fc_epilogue(acc, params, *, n_valid, approx_gelu):
    """bias-add -> GELU -> LayerNorm (affine). acc is f32 (tm, n_pad)."""
    bias = params[0:1, :]
    gamma = params[1:2, :]
    beta = params[2:3, :]

    h = acc + bias

    # Activation: exact (erf) GELU matches torch.nn.GELU / ACT2FN["gelu"];
    # tanh approximation (EUP path) available behind a flag.
    if approx_gelu:
        h = jax.nn.gelu(h, approximate=True)
    else:
        h = 0.5 * h * (1.0 + jax.lax.erf(h * (1.0 / math.sqrt(2.0))))

    # LayerNorm over the true output_dim (n_valid).  Padded columns of h are
    # exactly zero (zero-padded weight & bias -> GELU(0) = 0), so the plain sum
    # gives the correct mean; the variance uses the centered two-pass form with
    # padded columns masked out of the squared-difference sum.
    inv_n = 1.0 / float(n_valid)
    mean = jnp.sum(h, axis=-1, keepdims=True) * inv_n
    diff = h - mean
    if h.shape[-1] != n_valid:
        col = jax.lax.broadcasted_iota(jnp.int32, h.shape, dimension=1)
        diff = jnp.where(col < n_valid, diff, 0.0)
    var = jnp.sum(diff * diff, axis=-1, keepdims=True) * inv_n
    normed = diff * jax.lax.rsqrt(var + LAYER_NORM_EPS)

    # Dropout: identity in eval mode.
    # TODO(synk): training-mode dropout (pltpu.prng_random_bits mask) not implemented.
    return normed * gamma + beta


def _fc_kernel_single(x_ref, w_ref, p_ref, o_ref, *, n_valid, approx_gelu):
    """grid = (row tiles,). Full reduction in one block (resident weight)."""
    acc = jnp.dot(x_ref[...], w_ref[...], preferred_element_type=jnp.float32)
    params = p_ref[...].astype(jnp.float32)
    o_ref[...] = _fc_epilogue(acc, params, n_valid=n_valid,
                              approx_gelu=approx_gelu).astype(o_ref.dtype)


def _fc_kernel_ktiled(x_ref, w_ref, p_ref, o_ref, acc_ref, *, n_valid, approx_gelu):
    """grid = (row tiles, K tiles).  K (reduction) is the innermost axis."""
    k = pl.program_id(1)
    prod = jnp.dot(x_ref[...], w_ref[...], preferred_element_type=jnp.float32)

    @pl.when(k == 0)
    def _():
        acc_ref[...] = prod          # assign-on-first-k (no zero-init + read-add)

    @pl.when(k > 0)
    def _():
        acc_ref[...] += prod

    @pl.when(k == pl.num_programs(1) - 1)
    def _():
        params = p_ref[...].astype(jnp.float32)
        o_ref[...] = _fc_epilogue(acc_ref[...], params, n_valid=n_valid,
                                  approx_gelu=approx_gelu).astype(o_ref.dtype)


# --------------------------------------------------------------------------- #
# Generation-aware planning + parameter prep (hoisted out of the per-call path)
# --------------------------------------------------------------------------- #
def _tpu_vmem_plan():
    cap = 64 * 1024 * 1024  # conservative default (v7x per-TC)
    try:
        info = pltpu.get_tpu_info()
        c = getattr(info, "vmem_capacity_bytes", None)
        if c:
            cap = int(c)
    except Exception:
        pass
    vmem_limit = max(32 * 1024 * 1024, cap - 24 * 1024 * 1024)
    budget = int(vmem_limit * 0.9)                 # planning headroom
    tm_target = 768 if cap >= 100 * 1024 * 1024 else 512
    return cap, vmem_limit, budget, tm_target


def _prepare(weight, bias, gamma, beta, *, compute_dtype=None, residency_override=None):
    """One-time weight padding / param packing + tiling plan."""
    K, N = weight.shape
    n_pad = _round_up(N, 128)                      # lane-dense output
    w_dtype = jnp.dtype(compute_dtype) if compute_dtype is not None else jnp.dtype(weight.dtype)
    w_it = w_dtype.itemsize

    cap, vmem_limit, budget, tm_target = _tpu_vmem_plan()

    k_pad8 = _round_up(K, 8)
    resident = (k_pad8 * n_pad * w_it) <= (budget // 3)
    if residency_override is not None:
        resident = bool(residency_override)

    if resident:
        tk = k_pad8
        k_pad = k_pad8
    else:
        tk = min(512, _round_up(K, 128))
        while tk > 128 and 2 * tk * n_pad * w_it > budget // 3:
            tk //= 2
        k_pad = _round_up(K, tk)
    kt = k_pad // tk

    w = weight.astype(w_dtype)
    if (k_pad, n_pad) != (K, N):
        w = jnp.pad(w, ((0, k_pad - K), (0, n_pad - N)))   # zero pad: numerically inert

    # bias / gamma / beta packed into a single (3, n_pad) f32 operand.
    params = jnp.stack([bias.astype(jnp.float32),
                        gamma.astype(jnp.float32),
                        beta.astype(jnp.float32)], axis=0)
    if n_pad != N:
        params = jnp.pad(params, ((0, 0), (0, n_pad - N)))  # pad MUST stay zero

    plan = dict(K=K, N=N, n_pad=n_pad, k_pad=k_pad, tk=tk, kt=kt,
                resident=resident, w_itemsize=w_it,
                vmem_cap=cap, vmem_limit=vmem_limit, budget=budget,
                tm_target=tm_target)
    return w, params, plan


def _call(x, w_pad, params, plan, *, compute_dtype=None, approximate_gelu=False):
    orig_lead = x.shape[:-1]
    K = x.shape[-1]
    assert K == plan["K"], "input feature dim does not match prepared weight"
    M = 1
    for d in orig_lead:
        M *= int(d)

    N, n_pad, k_pad, tk, kt = plan["N"], plan["n_pad"], plan["k_pad"], plan["tk"], plan["kt"]
    out_dtype = x.dtype
    x_cd = jnp.dtype(compute_dtype) if compute_dtype is not None else jnp.dtype(x.dtype)
    x_it = x_cd.itemsize
    out_it = jnp.dtype(out_dtype).itemsize
    sub = {4: 8, 2: 16, 1: 32}.get(x_it, 8)        # sublane pack for the compute dtype

    # ---- row-tile selection: VMEM-aware, generation-aware, waste-minimizing ----
    fixed = 2 * tk * n_pad * plan["w_itemsize"] + 2 * 3 * n_pad * 4
    per_row = 2 * tk * x_it + 2 * n_pad * out_it + (n_pad * 4 if kt > 1 else 0)
    tm_fit = max(sub, ((plan["budget"] - fixed) // per_row) // sub * sub)
    tm_cap = max(sub, min(plan["tm_target"], tm_fit, _round_up(M, sub)))

    mt = _cdiv(M, tm_cap)
    # Keep >=2 row tiles when cheap so the "parallel" axis can shard across the
    # two TensorCores on v7x (only when it does not add weight re-streaming).
    if mt == 1 and M >= 2 * sub and (kt == 1 or plan["vmem_cap"] < 100 * 1024 * 1024):
        mt = 2
    tm_eff = _round_up(_cdiv(M, mt), sub)
    m_pad = mt * tm_eff

    # ---- operand prep (zero padding is numerically inert) ----------------------
    x2d = x.reshape(M, K).astype(x_cd)
    if (m_pad, k_pad) != (M, K):
        x2d = jnp.pad(x2d, ((0, m_pad - M), (0, k_pad - K)))

    # Weight bytes are streamed once per row tile only in the K-tiled path.
    w_stream_factor = 1 if kt == 1 else mt
    cost = pl.CostEstimate(
        flops=2 * m_pad * k_pad * n_pad,
        transcendentals=m_pad * n_pad,
        bytes_accessed=int(m_pad * k_pad * x_it
                           + k_pad * n_pad * plan["w_itemsize"] * w_stream_factor
                           + params.size * params.dtype.itemsize
                           + m_pad * n_pad * out_it),
    )

    if kt == 1:
        kernel = functools.partial(_fc_kernel_single, n_valid=N,
                                   approx_gelu=approximate_gelu)
        grid_spec = pltpu.PrefetchScalarGridSpec(
            num_scalar_prefetch=0,
            grid=(mt,),
            in_specs=[
                pl.BlockSpec((tm_eff, k_pad), lambda i: (i, 0)),   # x rows
                pl.BlockSpec((k_pad, n_pad), lambda i: (0, 0)),    # resident weight
                pl.BlockSpec((3, n_pad), lambda i: (0, 0)),        # bias/gamma/beta
            ],
            out_specs=pl.BlockSpec((tm_eff, n_pad), lambda i: (i, 0)),
            scratch_shapes=[],
        )
        dim_sem = ("parallel",)
    else:
        kernel = functools.partial(_fc_kernel_ktiled, n_valid=N,
                                   approx_gelu=approximate_gelu)
        grid_spec = pltpu.PrefetchScalarGridSpec(
            num_scalar_prefetch=0,
            grid=(mt, kt),                                          # reduction axis last
            in_specs=[
                pl.BlockSpec((tm_eff, tk), lambda i, k: (i, k)),    # x rows
                pl.BlockSpec((tk, n_pad), lambda i, k: (k, 0)),     # streamed weight
                pl.BlockSpec((3, n_pad), lambda i, k: (0, 0)),      # bias/gamma/beta
            ],
            out_specs=pl.BlockSpec((tm_eff, n_pad), lambda i, k: (i, 0)),
            scratch_shapes=[pltpu.VMEM((tm_eff, n_pad), jnp.float32)],  # f32 acc
        )
        dim_sem = ("parallel", "arbitrary")

    out2d = pl.pallas_call(
        kernel,
        out_shape=jax.ShapeDtypeStruct((m_pad, n_pad), out_dtype),
        grid_spec=grid_spec,
        compiler_params=pltpu.CompilerParams(
            dimension_semantics=dim_sem,
            vmem_limit_bytes=int(plan["vmem_limit"]),
        ),
        cost_estimate=cost,
    )(x2d, w_pad, params)

    return out2d[:M, :N].reshape(*orig_lead, N)


# --------------------------------------------------------------------------- #
# Public API
# --------------------------------------------------------------------------- #
def make_fully_connected_layer(weight, bias, gamma, beta, *, compute_dtype=None,
                               approximate_gelu=False, residency_override=None):
    """Hoisted-prep variant: pad/pack parameters once, return an apply(x) closure."""
    w_pad, params, plan = _prepare(weight, bias, gamma, beta,
                                   compute_dtype=compute_dtype,
                                   residency_override=residency_override)

    def apply(x):
        return _call(x, w_pad, params, plan, compute_dtype=compute_dtype,
                     approximate_gelu=approximate_gelu)

    return apply


def fully_connected_layer(x, weight, bias, gamma, beta, *, compute_dtype=None,
                          approximate_gelu=False, residency_override=None):
    """x: (batch, seq, input_dim); weight stored (input_dim, output_dim)."""
    w_pad, params, plan = _prepare(weight, bias, gamma, beta,
                                   compute_dtype=compute_dtype,
                                   residency_override=residency_override)
    return _call(x, w_pad, params, plan, compute_dtype=compute_dtype,
                 approximate_gelu=approximate_gelu)


# --------------------------------------------------------------------------- #
# Reference + self-test
# --------------------------------------------------------------------------- #
def reference_forward(x, weight, bias, gamma, beta):
    h = jnp.einsum("bsk,kn->bsn", x, weight,
                   precision=jax.lax.Precision.HIGHEST) + bias
    h = 0.5 * h * (1.0 + jax.lax.erf(h / math.sqrt(2.0)))
    mean = jnp.mean(h, axis=-1, keepdims=True)
    var = jnp.mean((h - mean) ** 2, axis=-1, keepdims=True)
    h = (h - mean) * jax.lax.rsqrt(var + LAYER_NORM_EPS)
    return h * gamma + beta


if __name__ == "__main__":
    batch, seq, input_dim, output_dim = 2, 8, 32, 64

    key = jax.random.PRNGKey(0)
    kx, kw, kb, kg, kbe = jax.random.split(key, 5)

    x = jax.random.normal(kx, (batch, seq, input_dim), dtype=jnp.float32)
    bound = 1.0 / math.sqrt(input_dim)
    weight = jax.random.uniform(kw, (input_dim, output_dim),
                                minval=-bound, maxval=bound, dtype=jnp.float32)
    bias = jax.random.uniform(kb, (output_dim,),
                              minval=-bound, maxval=bound, dtype=jnp.float32)
    gamma = jnp.ones((output_dim,), jnp.float32) + 0.01 * jax.random.normal(
        kg, (output_dim,), dtype=jnp.float32)
    beta = 0.01 * jax.random.normal(kbe, (output_dim,), dtype=jnp.float32)

    ref = reference_forward(x, weight, bias, gamma, beta)

    # Path 1: resident-weight fast path, f32 compute (prep hoisted via closure).
    layer = make_fully_connected_layer(weight, bias, gamma, beta)
    out = layer(x)
    jax.block_until_ready(out)
    assert out.shape == (batch, seq, output_dim)
    assert jnp.allclose(out, ref, atol=2e-4, rtol=2e-4), "f32 resident path mismatch"

    # Path 2: forced K-streaming — exercises the K-tiled accumulator kernel.
    K2, N2 = 1024, 128
    k2x, k2w, k2b = jax.random.split(jax.random.PRNGKey(1), 3)
    x2 = jax.random.normal(k2x, (batch, seq, K2), dtype=jnp.float32)
    bound2 = 1.0 / math.sqrt(K2)
    w2 = jax.random.uniform(k2w, (K2, N2), minval=-bound2, maxval=bound2,
                            dtype=jnp.float32)
    b2 = jax.random.uniform(k2b, (N2,), minval=-bound2, maxval=bound2,
                            dtype=jnp.float32)
    g2 = jnp.ones((N2,), jnp.float32)
    be2 = jnp.zeros((N2,), jnp.float32)
    out2 = fully_connected_layer(x2, w2, b2, g2, be2, residency_override=False)
    jax.block_until_ready(out2)
    ref2 = reference_forward(x2, w2, b2, g2, be2)
    assert jnp.allclose(out2, ref2, atol=1e-3, rtol=1e-3), "K-tiled path mismatch"

    # Path 3: bf16 compute (MXU-native dtype) with f32 accumulation / epilogue.
    out3 = fully_connected_layer(x, weight, bias, gamma, beta,
                                 compute_dtype=jnp.bfloat16)
    jax.block_until_ready(out3)
    assert jnp.allclose(out3, ref, atol=5e-2, rtol=5e-2), "bf16 path mismatch"

    print("KERNEL_OK")
</pallas_src>

<mosaic_0001>
module attributes {stable_mosaic.version = 11 : i64} {
  func.func @_fc_kernel_single(%arg0: i32, %arg1: memref<8x32xf32, #tpu.memory_space<vmem>>, %arg2: memref<32x128xf32, #tpu.memory_space<vmem>>, %arg3: memref<3x128xf32, #tpu.memory_space<vmem>>, %arg4: memref<8x128xf32, #tpu.memory_space<vmem>>) attributes {dimension_semantics = [#tpu.dimension_semantics<parallel>], iteration_bounds = array<i64: 2>, scalar_prefetch = 0 : i64, scratch_operands = 0 : i64, tpu.core_type = #tpu.core_type<tc>, window_params = [{transform_indices = @transform_0, window_bounds = array<i64: 8, 32>}, {pipeline_mode = #tpu.pipeline_mode<synchronous>, transform_indices = @transform_1, window_bounds = array<i64: 32, 128>}, {pipeline_mode = #tpu.pipeline_mode<synchronous>, transform_indices = @transform_2, window_bounds = array<i64: 3, 128>}, {transform_indices = @transform_3, window_bounds = array<i64: 8, 128>}]} {
    %c0 = arith.constant 0 : index
    %c0_0 = arith.constant 0 : index
    %0 = vector.load %arg1[%c0, %c0_0] : memref<8x32xf32, #tpu.memory_space<vmem>>, vector<8x32xf32>
    %c0_1 = arith.constant 0 : index
    %c0_2 = arith.constant 0 : index
    %1 = vector.load %arg2[%c0_1, %c0_2] : memref<32x128xf32, #tpu.memory_space<vmem>>, vector<32x128xf32>
    %cst = arith.constant dense<0.000000e+00> : vector<8x128xf32>
    %2 = tpu.matmul %0, %1, %cst {dimension_numbers = #tpu.dot_dimension_numbers<[1], [0], [0], [1], [0, 0, 1, 1], [], []>} : vector<8x32xf32>, vector<32x128xf32>, vector<8x128xf32> -> vector<8x128xf32>
    %c0_3 = arith.constant 0 : index
    %c0_4 = arith.constant 0 : index
    %3 = vector.load %arg3[%c0_3, %c0_4] : memref<3x128xf32, #tpu.memory_space<vmem>>, vector<3x128xf32>
    %4 = vector.extract_strided_slice %3 {offsets = [0, 0], sizes = [1, 128], strides = [1, 1]} : vector<3x128xf32> to vector<1x128xf32>
    %5 = vector.extract_strided_slice %3 {offsets = [1, 0], sizes = [1, 128], strides = [1, 1]} : vector<3x128xf32> to vector<1x128xf32>
    %6 = vector.extract_strided_slice %3 {offsets = [2, 0], sizes = [1, 128], strides = [1, 1]} : vector<3x128xf32> to vector<1x128xf32>
    %7 = vector.broadcast %4 : vector<1x128xf32> to vector<8x128xf32>
    %8 = arith.addf %2, %7 : vector<8x128xf32>
    %cst_5 = arith.constant 5.000000e-01 : f32
    %9 = vector.broadcast %cst_5 : f32 to vector<8x128xf32>
    %10 = arith.mulf %9, %8 : vector<8x128xf32>
    %cst_6 = arith.constant 0.707106769 : f32
    %11 = vector.broadcast %cst_6 : f32 to vector<8x128xf32>
    %12 = arith.mulf %8, %11 : vector<8x128xf32>
    %13 = math.erf %12 : vector<8x128xf32>
    %cst_7 = arith.constant 1.000000e+00 : f32
    %14 = vector.broadcast %cst_7 : f32 to vector<8x128xf32>
    %15 = arith.addf %14, %13 : vector<8x128xf32>
    %16 = arith.mulf %10, %15 : vector<8x128xf32>
    %cst_8 = arith.constant dense<0.000000e+00> : vector<8xf32>
    %17 = vector.multi_reduction <add>, %16, %cst_8 [1] : vector<8x128xf32> to vector<8xf32>
    %18 = vector.shape_cast %17 : vector<8xf32> to vector<8x1xf32>
    %cst_9 = arith.constant 1.562500e-02 : f32
    %19 = vector.broadcast %cst_9 : f32 to vector<8x1xf32>
    %20 = arith.mulf %18, %19 : vector<8x1xf32>
    %21 = vector.broadcast %20 : vector<8x1xf32> to vector<8x128xf32>
    %22 = arith.subf %16, %21 : vector<8x128xf32>
    %23 = tpu.iota {dimensions = array<i32: 1>} : vector<8x128xi32>
    %c64_i32 = arith.constant 64 : i32
    %24 = vector.broadcast %c64_i32 : i32 to vector<8x128xi32>
    %25 = arith.cmpi slt, %23, %24 : vector<8x128xi32>
    %cst_10 = arith.constant 0.000000e+00 : f32
    %26 = vector.broadcast %cst_10 : f32 to vector<8x128xf32>
    %27 = arith.select %25, %22, %26 : vector<8x128xi1>, vector<8x128xf32>
    %28 = arith.mulf %27, %27 : vector<8x128xf32>
    %cst_11 = arith.constant dense<0.000000e+00> : vector<8xf32>
    %29 = vector.multi_reduction <add>, %28, %cst_11 [1] : vector<8x128xf32> to vector<8xf32>
    %30 = vector.shape_cast %29 : vector<8xf32> to vector<8x1xf32>
    %cst_12 = arith.constant 1.562500e-02 : f32
    %31 = vector.broadcast %cst_12 : f32 to vector<8x1xf32>
    %32 = arith.mulf %30, %31 : vector<8x1xf32>
    %cst_13 = arith.constant 9.99999996E-13 : f32
    %33 = vector.broadcast %cst_13 : f32 to vector<8x1xf32>
    %34 = arith.addf %32, %33 : vector<8x1xf32>
    %35 = math.rsqrt %34 : vector<8x1xf32>
    %36 = vector.broadcast %35 : vector<8x1xf32> to vector<8x128xf32>
    %37 = arith.mulf %27, %36 : vector<8x128xf32>
    %38 = vector.broadcast %5 : vector<1x128xf32> to vector<8x128xf32>
    %39 = arith.mulf %37, %38 : vector<8x128xf32>
    %40 = vector.broadcast %6 : vector<1x128xf32> to vector<8x128xf32>
    %41 = arith.addf %39, %40 : vector<8x128xf32>
    %c0_14 = arith.constant 0 : index
    %c0_15 = arith.constant 0 : index
    %42 = vector.load %arg4[%c0_14, %c0_15] : memref<8x128xf32, #tpu.memory_space<vmem>>, vector<8x128xf32>
    tpu.vector_store %arg4[%c0_14, %c0_15], %41 {strides = array<i32>} : memref<8x128xf32, #tpu.memory_space<vmem>>, vector<8x128xf32>,
    return
  }
  func.func @transform_0(%arg0: i32) -> (i32, i32) {
    %c0_i32 = arith.constant 0 : i32
    %c0_i32_0 = arith.constant 0 : i32
    return %arg0, %c0_i32 : i32, i32
  }
  func.func @transform_1(%arg0: i32) -> (i32, i32) {
    %c0_i32 = arith.constant 0 : i32
    %c0_i32_0 = arith.constant 0 : i32
    %c0_i32_1 = arith.constant 0 : i32
    return %c0_i32, %c0_i32_0 : i32, i32
  }
  func.func @transform_2(%arg0: i32) -> (i32, i32) {
    %c0_i32 = arith.constant 0 : i32
    %c0_i32_0 = arith.constant 0 : i32
    %c0_i32_1 = arith.constant 0 : i32
    return %c0_i32, %c0_i32_0 : i32, i32
  }
  func.func @transform_3(%arg0: i32) -> (i32, i32) {
    %c0_i32 = arith.constant 0 : i32
    %c0_i32_0 = arith.constant 0 : i32
    return %arg0, %c0_i32 : i32, i32
  }
}

</mosaic_0001>

<llo_original>
// kernel: tpu_custom_call.1
$region0: #{tpu_custom_call.1}
  #allocation0 [shape = 'u32[]', space=smem, size = 0x4, offset = 0x4, fixed_abs, tag = 'smem constant byte address 0x4 - core index']
  #allocation1 [shape = 'u32[144,128]{1,0:T(1,128)}', space=vmem, size = 0x12000, scoped, tag = 'internal scratch']
  %s0 = inlined_call_operand.hbm [shape: f32[16,32], index: 0, kind: input, shape index: {}]
  %s1 = inlined_call_operand.hbm [shape: f32[32,128], index: 1, kind: input, shape index: {}]
  %s2 = inlined_call_operand.vmem [shape: f32[3,128], index: 2, kind: input, shape index: {}]
  %s3 = inlined_call_operand.hbm [shape: f32[16,128], index: 3, kind: output, shape index: {}]
  %s4 = sld [smem:[#allocation0]]
  $region53: #{tpu_custom_call.1} parent=0
    _
  %s6 = ssub.s32 1, %s4
  %s7 = scalar_select 0, %s6, %s4
  $region1: #{tpu_custom_call.1} parent=0
    #allocation2 [shape = 'u8[8192]{0}', space=vmem, size = 0x2000, scoped, tag = 'input window, operand 0']
    #allocation3 [shape = 's32[2]{0}', space=sflag, size = 0x8, scoped, tag = 'scoped memory for tpu_custom_call.1']
    #allocation4 [shape = 's32[2]{0}', space=sflag, size = 0x8, scoped, tag = 'scoped memory for tpu_custom_call.1']
    #allocation5 [shape = 'u8[16384]{0}', space=vmem, size = 0x4000, scoped, tag = 'input window, operand 1, single buffered']
    #allocation6 [shape = 's32[1]{0}', space=sflag, size = 0x4, scoped, tag = 'scoped memory for tpu_custom_call.1']
    #allocation7 [shape = 'u8[8192]{0}', space=vmem, size = 0x2000, scoped, tag = 'output window, operand 0']
    %8 = vsyncpa [#allocation3], 0
    %s9 = scalar_lea.sflag [#allocation3], 1
    %10 = vsyncpa %s9, 0
    %11 = vsyncpa [#allocation6], 0
    %12 = vsyncpa [#allocation4], 0
    %s13 = scalar_lea.sflag [#allocation4], 1
    %14 = vsyncpa %s13, 0
    loop: start=0, step=1, limit=4
    $region2: #{tpu_custom_call.1} parent=1 // loop_pre_header
      _
    $region3: #{tpu_custom_call.1} parent=1 // loop_header
      %s16 = sphi 0, %s20
      %p17 = scmp.ge.s32.totalorder %s16, 4
      %s26 = sphi 0, %s28
      %s29 = sphi 0, %s26
      %s30 = sphi 0, %s29
      %s46 = sphi 0, %s30
      %s50 = sphi 0, %s50
      %s52 = sphi 0, %s50
      %s53 = sphi 0, %s52
      %s67 = sphi 0, %s53
      %s71 = sphi 0, %s71
      %s73 = sphi 0, %s71
      %s74 = sphi 0, %s73
      %s88 = sphi 0, %s74
      %s94 = sphi 0, %s96
      %s97 = sphi 0, %s94
      %s98 = sphi 0, %s97
      %s114 = sphi 0, %s98
    $region4: #{tpu_custom_call.1} parent=1 // loop_header_branch
      %19 = sbr.rel (%p17) target = $region8
    $region5: #{tpu_custom_call.1} parent=1 // loop_body
      %s21 = ssub.s32 %s16, 1
      %s22 = ssub.s32 %s16, 2
      %s23 = sadd.s32 %s16, 1
      %s24 = ssub.s32 %s16, %s23
      %p25 = scmp.eq.s32.totalorder %s24, 0
      %s27 = sadd.s32 %s26, 1
      %s28 = scalar_select %p25, %s26, %s27
      %p31 = pneg %p25
      %p32 = scmp.eq.s32.totalorder %s16, 1
      %p33 = por %p31, %p32
      %p34 = scmp.ne.s32.totalorder %s26, %s29
      %p35 = scmp.eq.s32.totalorder %s16, 0
      %p36 = por %p34, %p35
      %p37 = scmp.ne.s32.totalorder %s26, %s29
      %p38 = scmp.eq.s32.totalorder %s21, 1
      %p39 = por %p37, %p38
      %p40 = scmp.ne.s32.totalorder %s29, %s30
      %p41 = scmp.eq.s32.totalorder %s21, 0
      %p42 = por %p40, %p41
      %p43 = scmp.ne.s32.totalorder %s29, %s30
      %p44 = scmp.eq.s32.totalorder %s22, 1
      %p45 = por %p43, %p44
      %p47 = scmp.ne.s32.totalorder %s30, %s46
      %p48 = scmp.eq.s32.totalorder %s22, 0
      %p49 = por %p47, %p48
      %s51 = sadd.s32 %s50, 1
      %p54 = scmp.eq.s32.totalorder %s16, 1
      %p55 = scmp.ne.s32.totalorder %s50, %s52
      %p56 = scmp.eq.s32.totalorder %s16, 0
      %p57 = por %p55, %p56
      %p58 = scmp.ne.s32.totalorder %s50, %s52
      %p59 = scmp.eq.s32.totalorder %s21, 1
      %p60 = por %p58, %p59
      %p61 = scmp.ne.s32.totalorder %s52, %s53
      %p62 = scmp.eq.s32.totalorder %s21, 0
      %p63 = por %p61, %p62
      %p64 = scmp.ne.s32.totalorder %s52, %s53
      %p65 = scmp.eq.s32.totalorder %s22, 1
      %p66 = por %p64, %p65
      %p68 = scmp.ne.s32.totalorder %s53, %s67
      %p69 = scmp.eq.s32.totalorder %s22, 0
      %p70 = por %p68, %p69
      %s72 = sadd.s32 %s71, 1
      %p75 = scmp.eq.s32.totalorder %s16, 1
      %p76 = scmp.ne.s32.totalorder %s71, %s73
      %p77 = scmp.eq.s32.totalorder %s16, 0
      %p78 = por %p76, %p77
      %p79 = scmp.ne.s32.totalorder %s71, %s73
      %p80 = scmp.eq.s32.totalorder %s21, 1
      %p81 = por %p79, %p80
      %p82 = scmp.ne.s32.totalorder %s73, %s74
      %p83 = scmp.eq.s32.totalorder %s21, 0
      %p84 = por %p82, %p83
      %p85 = scmp.ne.s32.totalorder %s73, %s74
      %p86 = scmp.eq.s32.totalorder %s22, 1
      %p87 = por %p85, %p86
      %p89 = scmp.ne.s32.totalorder %s74, %s88
      %p90 = scmp.eq.s32.totalorder %s22, 0
      %p91 = por %p89, %p90
      %s92 = ssub.s32 %s16, %s23
      %p93 = scmp.eq.s32.totalorder %s92, 0
      %s95 = sadd.s32 %s94, 1
      %s96 = scalar_select %p93, %s94, %s95
      %p99 = pneg %p93
      %p100 = scmp.eq.s32.totalorder %s16, 1
      %p101 = por %p99, %p100
      %p102 = scmp.ne.s32.totalorder %s94, %s97
      %p103 = scmp.eq.s32.totalorder %s16, 0
      %p104 = por %p102, %p103
      %p105 = scmp.ne.s32.totalorder %s94, %s97
      %p106 = scmp.eq.s32.totalorder %s21, 1
      %p107 = por %p105, %p106
      %p108 = scmp.ne.s32.totalorder %s97, %s98
      %p109 = scmp.eq.s32.totalorder %s21, 0
      %p110 = por %p108, %p109
      %p111 = scmp.ne.s32.totalorder %s97, %s98
      %p112 = scmp.eq.s32.totalorder %s22, 1
      %p113 = por %p111, %p112
      %p115 = scmp.ne.s32.totalorder %s98, %s114
      %p116 = scmp.eq.s32.totalorder %s22, 0
      %p117 = por %p115, %p116
      %p118 = scmp.le.s32.totalorder 1, %s16
      %p119 = scmp.lt.s32.totalorder %s16, 3
      %p120 = pnand %p118, %p119
      %p121 = pneg %p120
      // Predicated region
      $region9: #{tpu_custom_call.1} parent=5 // pred_check
        _
      $region10: #{tpu_custom_call.1} parent=5 // pred_check_branch
        %123 = sbr.rel (%p120) target = $region12
      $region11: #{tpu_custom_call.1} parent=5 // pred_region
        %s124 = ssub.s32 %s16, 1
        // Predicated region
        $region13: #{tpu_custom_call.1} parent=11 // pred_check
          %p125 = pneg %p63
        $region14: #{tpu_custom_call.1} parent=11 // pred_check_branch
          %127 = sbr.rel (%p125) target = $region16
        $region15: #{tpu_custom_call.1} parent=11 // pred_region
          %s129 = ssub.s32 512, 512
          %130 = vsyncadd [#allocation6], %s129
          %s131 = sshll.u32 [#allocation5], 4
          %s132 = int_to_ptr.vmem [resolvable:$true] %s131
          %137 = dma.hbm_to_vmem [thread:$0]  %s1, 512, %s132, [#allocation6], 128, 128, 8
        $region16: #{tpu_custom_call.1} parent=11 // pred_fallthru
          _
        // Predicated region
        $region17: #{tpu_custom_call.1} parent=11 // pred_check
          %p138 = pneg %p84
        $region18: #{tpu_custom_call.1} parent=11 // pred_check_branch
          %140 = sbr.rel (%p138) target = $region20
        $region19: #{tpu_custom_call.1} parent=11 // pred_region
          _
        $region20: #{tpu_custom_call.1} parent=11 // pred_fallthru
          _
      $region12: #{tpu_custom_call.1} parent=5 // pred_fallthru
        _
      %p141 = scmp.lt.s32.totalorder %s16, 2
      // Predicated region
      $region21: #{tpu_custom_call.1} parent=5 // pred_check
        %p142 = pneg %p141
      $region22: #{tpu_custom_call.1} parent=5 // pred_check_branch
        %144 = sbr.rel (%p142) target = $region24
      $region23: #{tpu_custom_call.1} parent=5 // pred_region
        // Predicated region
        $region25: #{tpu_custom_call.1} parent=23 // pred_check
          %p145 = pneg %p36
        $region26: #{tpu_custom_call.1} parent=23 // pred_check_branch
          %147 = sbr.rel (%p145) target = $region28
        $region27: #{tpu_custom_call.1} parent=23 // pred_region
          %s148 = sand.u32 %s26, 1
          %s149 = scalar_lea.sflag [#allocation3], %s148
          %s150 = sand.u32 %s26, 1
          %s151 = smul.addr %s150, 8
          %s152 = scalar_lea.vmem [#allocation2], %s151
          %s154 = ssub.s32 128, 128
          %155 = vsyncadd %s149, %s154
          %s156 = smul.addr %s16, 128
          %s157 = scalar_lea.hbm %s0, %s156
          %s159 = sshll.u32 %s152, 4
          %s160 = int_to_ptr.vmem [resolvable:$true] %s159
          %162 = dma.hbm_to_vmem [thread:$0]  %s157, 128, %s160, %s149
        $region28: #{tpu_custom_call.1} parent=23 // pred_fallthru
          _
      $region24: #{tpu_custom_call.1} parent=5 // pred_fallthru
        _
      %p163 = scmp.le.s32.totalorder 1, %s16
      %p164 = scmp.lt.s32.totalorder %s16, 3
      %p165 = pnand %p163, %p164
      %p166 = pneg %p165
      // Predicated region
      $region29: #{tpu_custom_call.1} parent=5 // pred_check
        _
      $region30: #{tpu_custom_call.1} parent=5 // pred_check_branch
        %168 = sbr.rel (%p165) target = $region32
      $region31: #{tpu_custom_call.1} parent=5 // pred_region
        %s169 = ssub.s32 %s16, 1
        %s170 = sand.u32 %s29, 1
        %s171 = scalar_lea.sflag [#allocation3], %s170
        %s172 = sand.u32 %s29, 1
        %s173 = smul.addr %s172, 8
        %s174 = scalar_lea.vmem [#allocation2], %s173
        // Predicated region
        $region33: #{tpu_custom_call.1} parent=31 // pred_check
          %p175 = pneg %p42
        $region34: #{tpu_custom_call.1} parent=31 // pred_check_branch
          %177 = sbr.rel (%p175) target = $region36
        $region35: #{tpu_custom_call.1} parent=31 // pred_region
          %178 = dma.done %s171, 128
        $region36: #{tpu_custom_call.1} parent=31 // pred_fallthru
          _
        // Predicated region
        $region37: #{tpu_custom_call.1} parent=31 // pred_check
          %p179 = pneg %p63
        $region38: #{tpu_custom_call.1} parent=31 // pred_check_branch
          %181 = sbr.rel (%p179) target = $region40
        $region39: #{tpu_custom_call.1} parent=31 // pred_region
          %182 = dma.done [#allocation6], 512
        $region40: #{tpu_custom_call.1} parent=31 // pred_fallthru
          _
        %s183 = sand.u32 %s29, 1
        %s184 = scalar_lea.sflag [#allocation3], %s183
        %s185 = sand.u32 %s29, 1
        %s186 = smul.addr %s185, 8
        %s187 = scalar_lea.vmem [#allocation2], %s186
        %p188 = pneg %p42
        %p189 = pneg %p39
        %p190 = pneg %p63
        %p191 = pneg %p60
        %p192 = pneg %p84
        %p193 = pneg %p81
        %p194 = pneg %p110
        %p195 = pneg %p107
        %s196 = sand.u32 %s97, 1
        %s197 = scalar_lea.sflag [#allocation4], %s196
        %s198 = sand.u32 %s97, 1
        %s199 = smul.addr %s198, 8
        %s200 = scalar_lea.vmem [#allocation7], %s199
        %v201 = vld [vmem:[%s174] sm:$0xff]
        %v202 = vld [vmem:[#allocation5] sm:$0xff]
        %v203 = vld [vmem:[#allocation5 + $0x8] sm:$0xff]
        %v204 = vld [vmem:[#allocation5 + $0x10] sm:$0xff]
        %v205 = vld [vmem:[#allocation5 + $0x18] sm:$0xff]
        %v206 = vld [vmem:[%s2] sm:$0x7]
        %v207 = vlaneseq
        %v208 = vshrl.u32 %v207, 7
        %v209 = vsub.s32 0, %v208
        %v210 = vrot.slane %v206, %v209
        %vm211 = vcmask 261120
        %v213 = vsel %vm211, %v201, 0
        %215 = vmatprep.subr.mxu0 0.0
        %216 = vmatpush1.msra.mxu0 %v202
        %217 = vmatprep.subr.mxu0 0.0
        %218 = vmatpush1.msra.mxu0 %v203
        %219 = vmatprep.subr.mxu0 0.0
        %220 = vmatpush1.msra.mxu0 %v204
        %221 = vmatprep.subr.mxu0 0.0
        %222 = vmatpush1.msra.mxu0 %v205
        %223 = vmatprep.subr.mxu0 0.0
        %224 = vmatpush1.msra.mxu0 0.0
        %225 = vmatprep.subr.mxu0 0.0
        %226 = vmatpush1.msra.mxu0 0.0
        %227 = vmatprep.subr.mxu0 0.0
        %228 = vmatpush1.msra.mxu0 0.0
        %229 = vmatprep.subr.mxu0 0.0
        %230 = vmatpush1.msra.mxu0 0.0
        %231 = vmatprep.subr.mxu0 0.0
        %232 = vmatpush1.msra.mxu0 0.0
        %233 = vmatprep.subr.mxu0 0.0
        %234 = vmatpush1.msra.mxu0 0.0
        %235 = vmatprep.subr.mxu0 0.0
        %236 = vmatpush1.msra.mxu0 0.0
        %237 = vmatprep.subr.mxu0 0.0
        %238 = vmatpush1.msra.mxu0 0.0
        %239 = vmatprep.subr.mxu0 0.0
        %240 = vmatpush1.msra.mxu0 0.0
        %241 = vmatprep.subr.mxu0 0.0
        %242 = vmatpush1.msra.mxu0 0.0
        %243 = vmatprep.subr.mxu0 0.0
        %244 = vmatpush1.msra.mxu0 0.0
        %245 = vmatprep.subr.mxu0 0.0
        %246 = vmatpush1.msra.mxu0 0.0
        %247 = vmatprep.subr.mxu0 0.0
        %248 = vmatpush1.msra.mxu0 0.0
        %249 = vmatprep.subr.mxu0 0.0
        %250 = vmatpush1.msra.mxu0 0.0
        %251 = vmatprep.subr.mxu0 0.0
        %252 = vmatpush1.msra.mxu0 0.0
        %253 = vmatprep.subr.mxu0 0.0
        %254 = vmatpush1.msra.mxu0 0.0
        %255 = vmatprep.subr.mxu0 0.0
        %256 = vmatpush1.msra.mxu0 0.0
        %257 = vmatprep.subr.mxu0 0.0
        %258 = vmatpush1.msra.mxu0 0.0
        %259 = vmatprep.subr.mxu0 0.0
        %260 = vmatpush1.msra.mxu0 0.0
        %261 = vmatprep.subr.mxu0 0.0
        %262 = vmatpush1.msra.mxu0 0.0
        %263 = vmatprep.subr.mxu0 0.0
        %264 = vmatpush1.msra.mxu0 0.0
        %265 = vmatprep.subr.mxu0 0.0
        %266 = vmatpush1.msra.mxu0 0.0
        %267 = vmatprep.subr.mxu0 0.0
        %268 = vmatpush1.msra.mxu0 0.0
        %269 = vmatprep.subr.mxu0 0.0
        %270 = vmatpush1.msra.mxu0 0.0
        %271 = vmatprep.subr.mxu0 0.0
        %272 = vmatpush1.msra.mxu0 0.0
        %273 = vmatprep.subr.mxu0 0.0
        %274 = vmatpush1.msra.mxu0 0.0
        %275 = vmatprep.subr.mxu0 0.0
        %276 = vmatpush1.msra.mxu0 0.0
        %277 = vmatprep.subr.mxu0 0.0
        %278 = vmatpush1.msra.mxu0 0.0
        %279 = vmatprep.mubr.f32.mxu0 0.0
        %280 = vmatmul.mubr.f32.gmra.mrb[0].mxu0 %v213
        %v281 = vpop.f32.mrb[0].mxu0
        %v282 = vadd.f32 %v210, %v281
        %v283 = vpop.f32.mrb[0].mxu0
        %284 = vdwg.mxu0
        %v285 = vmul.f32 %v282, 0.5
        %v286 = vmul.f32 %v282, 0.70710677
        %v287 = verf.f32.pop %v286
        %v288 = vadd.f32 %v287, 1.0
        %v289 = vmul.f32 %v285, %v288
        %290 = vadd.xlane.f32.xlu0 %v289
        %v291 = vpop.xlane.xlu0 %290
        %v292 = vmul.f32 %v291, 0.015625
        %v293 = vsub.f32 %v289, %v292
        %v294 = vlaneseq
        %v295 = vand.u32 %v294, 127
        %vm296 = vcmp.lt.s32.totalorder %v295, 64
        %v297 = vsel %vm296, %v293, 0.0
        %v298 = vmul.f32 %v297, %v297
        %299 = vadd.xlane.f32.xlu0 %v298
        %v300 = vpop.xlane.xlu0 %299
        %v301 = vmul.f32 %v300, 0.015625
        %v302 = vadd.f32 %v301, 1e-12
        %v303 = vrsqrt.pop %v302
        %v304 = vmul.f32 %v297, %v303
        %v305 = vlaneseq
        %v306 = vshrl.u32 %v305, 7
        %v307 = vsub.s32 1, %v306
        %v308 = vrot.slane %v206, %v307
        %v309 = vmul.f32 %v304, %v308
        %v310 = vlaneseq
        %v311 = vshrl.u32 %v310, 7
        %v312 = vsub.s32 2, %v311
        %v313 = vrot.slane %v206, %v312
        %v314 = vadd.f32 %v309, %v313
        %315 = vst [vmem:[%s200] sm:$0xff] %v314
        %s316 = sand.u32 %s97, 1
        %s317 = scalar_lea.sflag [#allocation4], %s316
        %s318 = sand.u32 %s97, 1
        %s319 = smul.addr %s318, 8
        %s320 = scalar_lea.vmem [#allocation7], %s319
        // Predicated region
        $region41: #{tpu_custom_call.1} parent=31 // pred_check
          %p321 = pneg %p107
        $region42: #{tpu_custom_call.1} parent=31 // pred_check_branch
          %323 = sbr.rel (%p321) target = $region44
        $region43: #{tpu_custom_call.1} parent=31 // pred_region
          %s325 = ssub.s32 128, 128
          %326 = vsyncadd %s317, %s325
          %s327 = smul.addr %s21, 128
          %s328 = scalar_lea.hbm %s3, %s327
          %s330 = sshll.u32 %s320, 4
          %s331 = int_to_ptr.vmem [resolvable:$true] %s330
          %333 = dma.vmem_to_hbm [thread:$0]  %s331, 128, %s328, %s317
        $region44: #{tpu_custom_call.1} parent=31 // pred_fallthru
          _
      $region32: #{tpu_custom_call.1} parent=5 // pred_fallthru
        _
      %p334 = scmp.le.s32.totalorder 2, %s16
      // Predicated region
      $region45: #{tpu_custom_call.1} parent=5 // pred_check
        %p335 = pneg %p334
      $region46: #{tpu_custom_call.1} parent=5 // pred_check_branch
        %337 = sbr.rel (%p335) target = $region48
      $region47: #{tpu_custom_call.1} parent=5 // pred_region
        %s338 = ssub.s32 %s16, 2
        // Predicated region
        $region49: #{tpu_custom_call.1} parent=47 // pred_check
          %p339 = pneg %p113
        $region50: #{tpu_custom_call.1} parent=47 // pred_check_branch
          %341 = sbr.rel (%p339) target = $region52
        $region51: #{tpu_custom_call.1} parent=47 // pred_region
          %s342 = sand.u32 %s98, 1
          %s343 = scalar_lea.sflag [#allocation4], %s342
          %s344 = sand.u32 %s98, 1
          %s345 = smul.addr %s344, 8
          %s346 = scalar_lea.vmem [#allocation7], %s345
          %347 = dma.done %s343, 128
        $region52: #{tpu_custom_call.1} parent=47 // pred_fallthru
          _
      $region48: #{tpu_custom_call.1} parent=5 // pred_fallthru
        _
    $region6: #{tpu_custom_call.1} parent=1 // loop_footer
      %s20 = sadd.s32 1, %s16
    $region7: #{tpu_custom_call.1} parent=1 // loop_footer_branch
      %15 = sbr.rel target = $region3
    $region8: #{tpu_custom_call.1} parent=1 // loop_exit
      _
    %348 = vsyncpa [#allocation3], 1
    %s349 = scalar_lea.sflag [#allocation3], 1
    %350 = vsyncpa %s349, 1
    %351 = vsyncpa [#allocation6], 1
    %352 = vsyncpa [#allocation4], 1
    %s353 = scalar_lea.sflag [#allocation4], 1
    %354 = vsyncpa %s353, 1

</llo_original>
